<compile_context>
chip_gen: v6e
topology: v6e:2x2x1
jax: 0.10.0
libtpu: 0.0.40
codegen_flags: <defaults>
</compile_context>

<pallas_src>
import functools
import math

import numpy as np
import jax
import jax.numpy as jnp
from jax import lax
from jax.experimental import pallas as pl
from jax.experimental.pallas import tpu as pltpu

SHIFT = 0
REDUCE = 1

LANE = 128
SUBLANE = 8
VMEM_LIMIT = 48 * 1024 * 1024  # below v7x's 64 MiB physical, above 16/32 MiB defaults


def _round_up(x, m):
    return ((x + m - 1) // m) * m


def _sigmoid(x):
    # EUP path: exp + approximate reciprocal, both off the VALU slots.
    return pl.reciprocal(1.0 + jnp.exp(-x), approx=True)


def _for_each_example(B, body):
    # B is a static Python int.  Fully unroll for small batches (gives the
    # LLO scheduler visibility over the per-row dynamic-slice copies); fall
    # back to a rolled loop for large batches to bound trace size.
    if B <= 32:
        for b in range(B):
            body(b)
    else:
        lax.fori_loop(0, B, lambda b, c: (body(b), c)[1], 0)


# ---------------------------------------------------------------------------
# Kernel 1: leaf transform (row-tiled).
#   proj = x @ [Wx | Wg] + [bx | bg]        (one fused matmul, bf16 -> f32)
#   c = proj[:, gate0];  h = sigmoid(proj[:, gate1]) * tanh(c)
# Gate g occupies lane-aligned columns [g*Hg, g*Hg + H).
# ---------------------------------------------------------------------------
def _leaf_kernel(x_ref, w_ref, b_ref, h_ref, c_ref):
    H = h_ref.shape[1]
    Hg = w_ref.shape[1] // 2
    proj = (jnp.dot(x_ref[...], w_ref[...], preferred_element_type=jnp.float32)
            + b_ref[...])
    c = proj[:, 0:H]
    gate = _sigmoid(proj[:, Hg:Hg + H])
    h_ref[...] = gate * jnp.tanh(c)
    c_ref[...] = c


def leaf_transform(x_bf16, w_leaf, b_leaf, *, H, tile_rows=512):
    """x_bf16: (N, E) bf16, N a multiple of 8 -> (h, c) each (Np, H) f32."""
    N, E = x_bf16.shape
    Hg2 = w_leaf.shape[1]
    TM = min(tile_rows, N)                       # N is a multiple of 8
    Np = _round_up(N, TM)
    if Np != N:
        x_bf16 = jnp.pad(x_bf16, ((0, Np - N), (0, 0)))
    grid = (Np // TM,)
    return pl.pallas_call(
        _leaf_kernel,
        out_shape=(jax.ShapeDtypeStruct((Np, H), jnp.float32),
                   jax.ShapeDtypeStruct((Np, H), jnp.float32)),
        grid=grid,
        in_specs=[pl.BlockSpec((TM, E), lambda i: (i, 0)),
                  pl.BlockSpec((E, Hg2), lambda i: (0, 0)),
                  pl.BlockSpec((1, Hg2), lambda i: (0, 0))],
        out_specs=(pl.BlockSpec((TM, H), lambda i: (i, 0)),
                   pl.BlockSpec((TM, H), lambda i: (i, 0))),
        compiler_params=pltpu.CompilerParams(
            dimension_semantics=("parallel",),
            vmem_limit_bytes=VMEM_LIMIT),
    )(x_bf16, w_leaf, b_leaf)


# ---------------------------------------------------------------------------
# Kernel 2: all TreeLSTM reduce rounds + classifier head in ONE pallas_call.
#   grid = (R,), round axis is sequential ("arbitrary").
#   Scalar-prefetch SMEM tables give, per round and example, the flat node
#   rows of the left/right children; the new node always lands at the
#   contiguous row block (T + r) * Bp.  The node (h, c) table is f32 VMEM
#   scratch, resident across the whole grid.
# ---------------------------------------------------------------------------
def _tree_kernel(left_ref, right_ref, root_ref,                 # SMEM (prefetch)
                 lh_ref, lc_ref, wl_ref, wr_ref, br_ref, wo_ref, bo_ref,
                 logits_ref,                                    # output (VMEM)
                 node_h, node_c, hl, hr, cl, cr,                # scratch (VMEM)
                 *, T, B):
    r = pl.program_id(0)
    Bp, H = hl.shape
    Hg = wl_ref.shape[1] // 5
    n_leaf = T * Bp

    # Round 0: load leaf states into the VMEM-resident node table and zero
    # the child staging buffers (padded rows b >= B stay deterministic).
    @pl.when(r == 0)
    def _init():
        node_h[0:n_leaf, :] = lh_ref[0:n_leaf, :]
        node_c[0:n_leaf, :] = lc_ref[0:n_leaf, :]
        hl[...] = jnp.zeros_like(hl)
        hr[...] = jnp.zeros_like(hr)
        cl[...] = jnp.zeros_like(cl)
        cr[...] = jnp.zeros_like(cr)

    # Gather this round's (left, right) children for every real example.
    def _gather_children(b):
        li = left_ref[r * B + b]
        ri = right_ref[r * B + b]
        hl[pl.ds(b, 1), :] = node_h[pl.ds(li, 1), :]
        cl[pl.ds(b, 1), :] = node_c[pl.ds(li, 1), :]
        hr[pl.ds(b, 1), :] = node_h[pl.ds(ri, 1), :]
        cr[pl.ds(b, 1), :] = node_c[pl.ds(ri, 1), :]

    _for_each_example(B, _gather_children)

    # Fused 5-gate projection: one matmul per child side (bf16 in, f32 acc).
    proj = (jnp.dot(hl[...].astype(jnp.bfloat16), wl_ref[...],
                    preferred_element_type=jnp.float32)
            + jnp.dot(hr[...].astype(jnp.bfloat16), wr_ref[...],
                      preferred_element_type=jnp.float32)
            + br_ref[...])
    i_g = _sigmoid(proj[:, 0 * Hg:0 * Hg + H])
    f_l = _sigmoid(proj[:, 1 * Hg:1 * Hg + H])
    f_r = _sigmoid(proj[:, 2 * Hg:2 * Hg + H])
    g_g = jnp.tanh(proj[:, 3 * Hg:3 * Hg + H])
    o_g = _sigmoid(proj[:, 4 * Hg:4 * Hg + H])
    c_new = i_g * g_g + f_l * cl[...] + f_r * cr[...]        # f32 recurrence
    h_new = o_g * jnp.tanh(c_new)

    # Scatter: example b's r-th internal node lives at row (T + r) * Bp + b,
    # i.e. one contiguous, sublane-aligned block of Bp rows.
    dst = pl.multiple_of((T + r) * Bp, SUBLANE)
    node_h[pl.ds(dst, Bp), :] = h_new
    node_c[pl.ds(dst, Bp), :] = c_new

    # Last round: gather per-example roots and run the (lane-dense) head.
    @pl.when(r == pl.num_programs(0) - 1)
    def _head():
        def _gather_root(b):
            hl[pl.ds(b, 1), :] = node_h[pl.ds(root_ref[b], 1), :]
        _for_each_example(B, _gather_root)
        logits_ref[...] = (jnp.dot(hl[...].astype(jnp.bfloat16), wo_ref[...],
                                   preferred_element_type=jnp.float32)
                           + bo_ref[...])


def tree_reduce_and_head(left_rows, right_rows, root_rows, leaves_h, leaves_c,
                         params, *, T, B, Bp, R, H, Hg, OP):
    n_nodes = (T + R) * Bp          # leaf + internal node rows (must fit VMEM)
    np_rows = leaves_h.shape[0]
    const2 = lambda r, *_: (0, 0)   # everything stays VMEM-resident across rounds
    kernel = functools.partial(_tree_kernel, T=T, B=B)

    grid_spec = pltpu.PrefetchScalarGridSpec(
        num_scalar_prefetch=3,
        grid=(R,),
        in_specs=[
            pl.BlockSpec((np_rows, H), const2),      # leaves_h
            pl.BlockSpec((np_rows, H), const2),      # leaves_c
            pl.BlockSpec((H, 5 * Hg), const2),       # w_reduce (left half)
            pl.BlockSpec((H, 5 * Hg), const2),       # w_reduce (right half)
            pl.BlockSpec((1, 5 * Hg), const2),       # b_reduce
            pl.BlockSpec((H, OP), const2),           # w_out (lane padded)
            pl.BlockSpec((1, OP), const2),           # b_out
        ],
        out_specs=pl.BlockSpec((Bp, OP), const2),
        scratch_shapes=[
            pltpu.VMEM((n_nodes, H), jnp.float32),   # node_h
            pltpu.VMEM((n_nodes, H), jnp.float32),   # node_c
            pltpu.VMEM((Bp, H), jnp.float32),        # h_l
            pltpu.VMEM((Bp, H), jnp.float32),        # h_r
            pltpu.VMEM((Bp, H), jnp.float32),        # c_l
            pltpu.VMEM((Bp, H), jnp.float32),        # c_r
        ],
    )
    return pl.pallas_call(
        kernel,
        out_shape=jax.ShapeDtypeStruct((Bp, OP), jnp.float32),
        grid_spec=grid_spec,
        compiler_params=pltpu.CompilerParams(
            dimension_semantics=("arbitrary",),      # rounds carry state
            vmem_limit_bytes=VMEM_LIMIT),
    )(left_rows, right_rows, root_rows,
      leaves_h, leaves_c,
      params["w_red_l"], params["w_red_r"], params["b_red"],
      params["w_out"], params["b_out"])


# ---------------------------------------------------------------------------
# Host-side schedule "compiler": shift-reduce transitions -> flat node rows.
# Node n of example b lives at row n * Bp + b.  Leaves are nodes 0..T-1
# (buffer.pop() consumes t = T-1 first: input is assumed reversed, as in the
# reference).  Example b's k-th REDUCE (executed at round k) produces node
# T + k.  Examples with fewer reduces get padded dummy rounds whose results
# land in never-read slots.
# ---------------------------------------------------------------------------
def build_schedule(transitions, T, B, Bp):
    transitions = np.asarray(transitions)
    assert transitions.shape[1] == B
    reduces = [[] for _ in range(B)]
    roots = np.zeros((B,), np.int64)
    for b in range(B):
        stack = []
        buf_next = T - 1
        n_internal = 0
        for tr in transitions[:, b]:
            tr = int(tr)
            if tr == SHIFT:
                assert buf_next >= 0, "Buffer underflow (too many SHIFTs)"
                stack.append(buf_next)
                buf_next -= 1
            elif tr == REDUCE:
                assert len(stack) >= 2, "Stack too small!"
                right = stack.pop()
                left = stack.pop()
                reduces[b].append((left, right))
                stack.append(T + n_internal)
                n_internal += 1
        assert stack, "Empty stack at end of transitions"
        roots[b] = stack[-1]          # reference pops the stack top as the root
    R = max(1, max(len(rs) for rs in reduces))
    left_rows = np.zeros((R, B), np.int32)
    right_rows = np.zeros((R, B), np.int32)
    for b in range(B):
        for k in range(R):
            if k < len(reduces[b]):
                ln, rn = reduces[b][k]
            else:
                ln, rn = 0, 0          # padded round: result is never read
            left_rows[k, b] = ln * Bp + b
            right_rows[k, b] = rn * Bp + b
    root_rows = (roots * Bp + np.arange(B)).astype(np.int32)
    return left_rows.reshape(-1), right_rows.reshape(-1), root_rows, R


# ---------------------------------------------------------------------------
# Forward pass
# ---------------------------------------------------------------------------
def treelstm_classifier_forward(tokens, transitions, params):
    """tokens: (B, T) int32; transitions: (2T-1, B) int array."""
    tokens = jnp.asarray(tokens, jnp.int32)
    B, T = tokens.shape
    H = params["hidden_dim"]
    E = params["embed_dim"]
    O = params["num_classes"]
    Hg = params["gate_stride"]
    OP = params["out_pad"]
    Bp = _round_up(B, SUBLANE)

    left_rows, right_rows, root_rows, R = build_schedule(
        np.asarray(transitions), T, B, Bp)

    # Embedding lookup (frozen bf16 table), laid out node-major (row t*Bp + b).
    emb = jnp.take(params["embedding"], tokens.T, axis=0)      # (T, B, E) bf16
    emb = jnp.pad(emb, ((0, 0), (0, Bp - B), (0, 0)))          # (T, Bp, E)
    x = emb.reshape(T * Bp, E)

    leaves_h, leaves_c = leaf_transform(x, params["w_leaf"], params["b_leaf"], H=H)

    logits_pad = tree_reduce_and_head(
        jnp.asarray(left_rows), jnp.asarray(right_rows), jnp.asarray(root_rows),
        leaves_h, leaves_c, params,
        T=T, B=B, Bp=Bp, R=R, H=H, Hg=Hg, OP=OP)
    return logits_pad[:B, :O]


# ---------------------------------------------------------------------------
# Pure-JAX reference (mirrors the PyTorch module, f32, same packed params).
# Dropout layers are in eval mode (identity); embedding is frozen.
# ---------------------------------------------------------------------------
def reference_forward(tokens, transitions, params):
    H = params["hidden_dim"]
    Hg = params["gate_stride"]
    O = params["num_classes"]
    emb_tab = params["embedding"].astype(jnp.float32)
    w_leaf = params["w_leaf"].astype(jnp.float32)
    b_leaf = params["b_leaf"]
    w_l = params["w_red_l"].astype(jnp.float32)
    w_r = params["w_red_r"].astype(jnp.float32)
    b_r = params["b_red"][0]
    w_out = params["w_out"].astype(jnp.float32)[:, :O]
    b_out = params["b_out"][0, :O]

    tokens = np.asarray(tokens)
    transitions = np.asarray(transitions)
    B, T = tokens.shape
    x = emb_tab[tokens]                                # (B, T, E)
    proj = x @ w_leaf + b_leaf                         # (B, T, 2*Hg)
    c_leaf = proj[..., 0:H]
    h_leaf = jax.nn.sigmoid(proj[..., Hg:Hg + H]) * jnp.tanh(c_leaf)

    outs = []
    for b in range(B):
        buffer = [(h_leaf[b, t], c_leaf[b, t]) for t in range(T)]
        stack = []
        for tr in transitions[:, b]:
            if int(tr) == SHIFT:
                stack.append(buffer.pop())
            elif int(tr) == REDUCE:
                h_rt, c_rt = stack.pop()
                h_lt, c_lt = stack.pop()
                p = h_lt @ w_l + h_rt @ w_r + b_r
                i_g = jax.nn.sigmoid(p[0 * Hg:0 * Hg + H])
                f_l = jax.nn.sigmoid(p[1 * Hg:1 * Hg + H])
                f_r = jax.nn.sigmoid(p[2 * Hg:2 * Hg + H])
                g_g = jnp.tanh(p[3 * Hg:3 * Hg + H])
                o_g = jax.nn.sigmoid(p[4 * Hg:4 * Hg + H])
                c_new = i_g * g_g + f_l * c_lt + f_r * c_rt
                h_new = o_g * jnp.tanh(c_new)
                stack.append((h_new, c_new))
        root_h = stack[-1][0]
        outs.append(root_h @ w_out + b_out)
    return jnp.stack(outs)


# ---------------------------------------------------------------------------
# Deterministic parameter construction (matches the PyTorch module shapes,
# then repacked into the lane-aligned kernel layouts).
# ---------------------------------------------------------------------------
def init_params(key, vocab_size, E, H, O):
    ks = jax.random.split(key, 9)
    stdv_cell = 1.0 / math.sqrt(H)   # TreeLSTMCell.reset_parameters
    stdv_x = 1.0 / math.sqrt(E)      # nn.Linear default (fan_in = E)
    stdv_out = 1.0 / math.sqrt(H)    # output Linear (fan_in = H)

    def u(k, shape, s):
        return jax.random.uniform(k, shape, jnp.float32, -s, s)

    Hg = _round_up(H, LANE)          # lane-aligned per-gate stride
    OP = _round_up(O, LANE)          # lane-dense classifier head

    # Frozen embedding "vectors" (synthetic); padding_idx=1 row zeroed.
    embedding = jax.random.normal(ks[0], (vocab_size, E), jnp.float32) * 0.1
    embedding = embedding.at[1].set(0.0)

    # Leaf projections: proj_x (-> c) and proj_x_gate (-> gate), fused.
    wx = u(ks[3], (E, H), stdv_x)
    bx = u(ks[4], (H,), stdv_x)
    wg = u(ks[5], (E, H), stdv_x)
    bg = u(ks[6], (H,), stdv_x)
    w_leaf = jnp.zeros((E, 2 * Hg), jnp.float32)
    w_leaf = w_leaf.at[:, 0:H].set(wx).at[:, Hg:Hg + H].set(wg)
    b_leaf = jnp.zeros((1, 2 * Hg), jnp.float32)
    b_leaf = b_leaf.at[0, 0:H].set(bx).at[0, Hg:Hg + H].set(bg)

    # TreeLSTMCell.reduce_layer: Linear(2H, 5H); gates (i, f_l, f_r, g, o).
    w_red = u(ks[1], (2 * H, 5 * H), stdv_cell)
    b_red = u(ks[2], (5 * H,), stdv_cell)
    w_red_pad = jnp.zeros((2 * H, 5 * Hg), jnp.float32)
    b_red_pad = jnp.zeros((1, 5 * Hg), jnp.float32)
    for g in range(5):
        w_red_pad = w_red_pad.at[:, g * Hg:g * Hg + H].set(
            w_red[:, g * H:(g + 1) * H])
        b_red_pad = b_red_pad.at[0, g * Hg:g * Hg + H].set(
            b_red[g * H:(g + 1) * H])
    w_red_l = w_red_pad[:H, :]       # acts on h_left
    w_red_r = w_red_pad[H:, :]       # acts on h_right (no host concat needed)

    # Classifier head (Dropout in eval = identity), lane-padded.
    wo = u(ks[7], (H, O), stdv_out)
    bo = u(ks[8], (O,), stdv_out)
    w_out = jnp.zeros((H, OP), jnp.float32).at[:, 0:O].set(wo)
    b_out = jnp.zeros((1, OP), jnp.float32).at[0, 0:O].set(bo)

    return {
        "embedding": embedding.astype(jnp.bfloat16),
        "w_leaf": w_leaf.astype(jnp.bfloat16), "b_leaf": b_leaf,
        "w_red_l": w_red_l.astype(jnp.bfloat16),
        "w_red_r": w_red_r.astype(jnp.bfloat16),
        "b_red": b_red_pad,
        "w_out": w_out.astype(jnp.bfloat16), "b_out": b_out,
        "hidden_dim": H, "embed_dim": E, "num_classes": O,
        "gate_stride": Hg, "out_pad": OP,
    }


if __name__ == "__main__":
    B, T, E, H, O, V = 2, 8, 32, 32, 5, 50

    key = jax.random.PRNGKey(0)
    kp, kt = jax.random.split(key)
    params = init_params(kp, V, E, H, O)

    tokens = jax.random.randint(kt, (B, T), 0, V, dtype=jnp.int32)

    # Valid shift-reduce transition sequences, shape (2T-1, B).
    col0 = [SHIFT, SHIFT] + [REDUCE, SHIFT] * (T - 2) + [REDUCE]   # left chain
    col1 = [SHIFT] * T + [REDUCE] * (T - 1)                        # shift-all then reduce
    transitions = np.stack([np.array(col0), np.array(col1)], axis=1)  # (15, 2)

    logits = treelstm_classifier_forward(tokens, transitions, params)
    jax.block_until_ready(logits)
    assert logits.shape == (B, O)
    assert bool(jnp.all(jnp.isfinite(logits)))

    # Semantics check against a pure-JAX mirror of the PyTorch module
    # (kernel matmuls are bf16-in / f32-accumulate -> loose tolerance).
    ref = reference_forward(tokens, transitions, params)
    np.testing.assert_allclose(np.asarray(logits), np.asarray(ref),
                               atol=1e-1, rtol=1e-1)
    print("KERNEL_OK")
</pallas_src>

<mosaic_0001>
module attributes {stable_mosaic.version = 11 : i64} {
  func.func @_leaf_kernel(%arg0: i32, %arg1: memref<64x32xbf16, #tpu.memory_space<vmem>>, %arg2: memref<32x256xbf16, #tpu.memory_space<vmem>>, %arg3: memref<1x256xf32, #tpu.memory_space<vmem>>, %arg4: memref<64x32xf32, #tpu.memory_space<vmem>>, %arg5: memref<64x32xf32, #tpu.memory_space<vmem>>) attributes {dimension_semantics = [#tpu.dimension_semantics<parallel>], iteration_bounds = array<i64: 1>, scalar_prefetch = 0 : i64, scratch_operands = 0 : i64, tpu.core_type = #tpu.core_type<tc>, window_params = [{transform_indices = @transform_0, window_bounds = array<i64: 64, 32>}, {pipeline_mode = #tpu.pipeline_mode<synchronous>, transform_indices = @transform_1, window_bounds = array<i64: 32, 256>}, {pipeline_mode = #tpu.pipeline_mode<synchronous>, transform_indices = @transform_2, window_bounds = array<i64: 1, 256>}, {transform_indices = @transform_3, window_bounds = array<i64: 64, 32>}, {transform_indices = @transform_4, window_bounds = array<i64: 64, 32>}]} {
    %c0 = arith.constant 0 : index
    %c0_0 = arith.constant 0 : index
    %0 = vector.load %arg1[%c0, %c0_0] : memref<64x32xbf16, #tpu.memory_space<vmem>>, vector<64x32xbf16>
    %c0_1 = arith.constant 0 : index
    %c0_2 = arith.constant 0 : index
    %1 = vector.load %arg2[%c0_1, %c0_2] : memref<32x256xbf16, #tpu.memory_space<vmem>>, vector<32x256xbf16>
    %cst = arith.constant dense<0.000000e+00> : vector<64x256xf32>
    %2 = tpu.matmul %0, %1, %cst {dimension_numbers = #tpu.dot_dimension_numbers<[1], [0], [0], [1], [0, 0, 1, 1], [], []>} : vector<64x32xbf16>, vector<32x256xbf16>, vector<64x256xf32> -> vector<64x256xf32>
    %c0_3 = arith.constant 0 : index
    %c0_4 = arith.constant 0 : index
    %3 = vector.load %arg3[%c0_3, %c0_4] : memref<1x256xf32, #tpu.memory_space<vmem>>, vector<1x256xf32>
    %4 = vector.broadcast %3 : vector<1x256xf32> to vector<64x256xf32>
    %5 = arith.addf %2, %4 : vector<64x256xf32>
    %6 = vector.extract_strided_slice %5 {offsets = [0, 0], sizes = [64, 32], strides = [1, 1]} : vector<64x256xf32> to vector<64x32xf32>
    %7 = vector.extract_strided_slice %5 {offsets = [0, 128], sizes = [64, 32], strides = [1, 1]} : vector<64x256xf32> to vector<64x32xf32>
    %cst_5 = arith.constant 0.000000e+00 : f32
    %8 = vector.broadcast %cst_5 : f32 to vector<64x32xf32>
    %9 = arith.subf %8, %7 : vector<64x32xf32>
    %10 = math.exp %9 : vector<64x32xf32>
    %cst_6 = arith.constant 1.000000e+00 : f32
    %11 = vector.broadcast %cst_6 : f32 to vector<64x32xf32>
    %12 = arith.addf %11, %10 : vector<64x32xf32>
    %13 = tpu.reciprocal %12 {approx = true} : vector<64x32xf32> -> vector<64x32xf32>
    %14 = math.tanh %6 : vector<64x32xf32>
    %15 = arith.mulf %13, %14 : vector<64x32xf32>
    %c0_7 = arith.constant 0 : index
    %c0_8 = arith.constant 0 : index
    %16 = vector.load %arg4[%c0_7, %c0_8] : memref<64x32xf32, #tpu.memory_space<vmem>>, vector<64x32xf32>
    tpu.vector_store %arg4[%c0_7, %c0_8], %15 {strides = array<i32>} : memref<64x32xf32, #tpu.memory_space<vmem>>, vector<64x32xf32>,
    %c0_9 = arith.constant 0 : index
    %c0_10 = arith.constant 0 : index
    %17 = vector.load %arg5[%c0_9, %c0_10] : memref<64x32xf32, #tpu.memory_space<vmem>>, vector<64x32xf32>
    tpu.vector_store %arg5[%c0_9, %c0_10], %6 {strides = array<i32>} : memref<64x32xf32, #tpu.memory_space<vmem>>, vector<64x32xf32>,
    return
  }
  func.func @transform_0(%arg0: i32) -> (i32, i32) {
    %c0_i32 = arith.constant 0 : i32
    %c0_i32_0 = arith.constant 0 : i32
    return %arg0, %c0_i32 : i32, i32
  }
  func.func @transform_1(%arg0: i32) -> (i32, i32) {
    %c0_i32 = arith.constant 0 : i32
    %c0_i32_0 = arith.constant 0 : i32
    %c0_i32_1 = arith.constant 0 : i32
    return %c0_i32, %c0_i32_0 : i32, i32
  }
  func.func @transform_2(%arg0: i32) -> (i32, i32) {
    %c0_i32 = arith.constant 0 : i32
    %c0_i32_0 = arith.constant 0 : i32
    %c0_i32_1 = arith.constant 0 : i32
    return %c0_i32, %c0_i32_0 : i32, i32
  }
  func.func @transform_3(%arg0: i32) -> (i32, i32) {
    %c0_i32 = arith.constant 0 : i32
    %c0_i32_0 = arith.constant 0 : i32
    return %arg0, %c0_i32 : i32, i32
  }
  func.func @transform_4(%arg0: i32) -> (i32, i32) {
    %c0_i32 = arith.constant 0 : i32
    %c0_i32_0 = arith.constant 0 : i32
    return %arg0, %c0_i32 : i32, i32
  }
}

</mosaic_0001>

<llo_original>
// kernel: tpu_custom_call.1
$region0: #{tpu_custom_call.1}
  #allocation0 [shape = 'u32[]', space=smem, size = 0x4, offset = 0x4, fixed_abs, tag = 'smem constant byte address 0x4 - core index']
  #allocation1 [shape = 'u32[144,128]{1,0:T(1,128)}', space=vmem, size = 0x12000, scoped, tag = 'internal scratch']
  %s0 = inlined_call_operand.vmem [shape: bf16[64,32], index: 0, kind: input, shape index: {}]
  %s1 = inlined_call_operand.vmem [shape: bf16[32,256], index: 1, kind: input, shape index: {}]
  %s2 = inlined_call_operand.vmem [shape: f32[1,256], index: 2, kind: input, shape index: {}]
  %s3 = inlined_call_operand.vmem [shape: f32[64,32], index: 3, kind: output, shape index: {0}]
  %s4 = inlined_call_operand.vmem [shape: f32[64,32], index: 4, kind: output, shape index: {1}]
  %5 = xla_tuple %s3, %s4
  %s6 = sld [smem:[#allocation0]]
  $region30: #{tpu_custom_call.1} parent=0
    _
  %s8 = ssub.s32 1, %s6
  %s9 = scalar_select 0, %s8, %s6
  // Predicated region
  $region2: #{tpu_custom_call.1} parent=0 // pred_check
    _
  $region3: #{tpu_custom_call.1} parent=0 // pred_check_branch
    %11 = sbr.rel (0) target = $region5
  $region4: #{tpu_custom_call.1} parent=0 // pred_region
    _
  $region5: #{tpu_custom_call.1} parent=0 // pred_fallthru
    _
  // Predicated region
  $region6: #{tpu_custom_call.1} parent=0 // pred_check
    _
  $region7: #{tpu_custom_call.1} parent=0 // pred_check_branch
    %13 = sbr.rel (0) target = $region9
  $region8: #{tpu_custom_call.1} parent=0 // pred_region
    _
  $region9: #{tpu_custom_call.1} parent=0 // pred_fallthru
    _
  // Predicated region
  $region10: #{tpu_custom_call.1} parent=0 // pred_check
    _
  $region11: #{tpu_custom_call.1} parent=0 // pred_check_branch
    %15 = sbr.rel (0) target = $region13
  $region12: #{tpu_custom_call.1} parent=0 // pred_region
    _
  $region13: #{tpu_custom_call.1} parent=0 // pred_fallthru
    _
  %v17 = vld [vmem:[%s0] sm:$0xf]
  %v18 = vld [vmem:[%s0 + $0x4] sm:$0xf]
  %v19 = vld [vmem:[%s0 + $0x8] sm:$0xf]
  %v20 = vld [vmem:[%s0 + $0xc] sm:$0xf]
  %v21 = vld [vmem:[%s0 + $0x10] sm:$0xf]
  %v22 = vld [vmem:[%s0 + $0x14] sm:$0xf]
  %v23 = vld [vmem:[%s0 + $0x18] sm:$0xf]
  %v24 = vld [vmem:[%s0 + $0x1c] sm:$0xf]
  %v25 = vld [vmem:[%s1] sm:$0xff]
  %v26 = vld [vmem:[%s1 + $0x8] sm:$0xff]
  %v27 = vld [vmem:[%s1 + $0x10] sm:$0xff]
  %v28 = vld [vmem:[%s1 + $0x18] sm:$0xff]
  %v29 = vld [vmem:[%s2] sm:$0x3]
  %v31 = vlaneseq
  %v32 = vshrl.u32 %v31, 7
  %v33 = vsub.s32 0, %v32
  %v34 = vrot.slane %v29, %v33
  %v35 = vlaneseq
  %v36 = vshrl.u32 %v35, 7
  %v37 = vsub.s32 1, %v36
  %v38 = vrot.slane %v29, %v37
  %v49 = vunpack.c.l.b16 %v17
  %v50 = vunpack.c.l.b16 %v18
  %v51 = vunpack.c.l.b16 %v19
  %v52 = vunpack.c.l.b16 %v20
  %v53 = vunpack.c.l.b16 %v21
  %v54 = vunpack.c.l.b16 %v22
  %v55 = vunpack.c.l.b16 %v23
  %v56 = vunpack.c.l.b16 %v24
  %v57 = vpack.c.b16 %v50, %v49
  %v58 = vpack.c.b16 %v52, %v51
  %v59 = vpack.c.b16 %v54, %v53
  %v60 = vpack.c.b16 %v56, %v55
  %v65 = vunpack.c.l.b16 %v25
  %v66 = vunpack.c.h.b16 %v25
  %v67 = vunpack.c.l.b16 %v26
  %v68 = vunpack.c.h.b16 %v26
  %v69 = vunpack.c.l.b16 %v27
  %v70 = vunpack.c.h.b16 %v27
  %v71 = vunpack.c.l.b16 %v28
  %v72 = vunpack.c.h.b16 %v28
  %v73 = vpack.c.b16 %v67, %v65
  %v74 = vpack.c.b16 %v68, %v66
  %v75 = vpack.c.b16 %v71, %v69
  %v76 = vpack.c.b16 %v72, %v70
  %vm81 = vcmask 261120
  %v83 = vsel %vm81, %v57, 0
  %v86 = vsel %vm81, %v58, 0
  %v89 = vsel %vm81, %v59, 0
  %v92 = vsel %vm81, %v60, 0
  %94 = vmatprep.subr.bf16.mxu0 0
  %95 = vmatpush1.bf16.msra.mxu0 0
  %96 = vmatprep.subr.bf16.mxu0 0
  %97 = vmatpush1.bf16.msra.mxu0 0
  %98 = vmatprep.subr.bf16.mxu0 0
  %99 = vmatpush1.bf16.msra.mxu0 0
  %100 = vmatprep.subr.bf16.mxu0 0
  %101 = vmatpush1.bf16.msra.mxu0 0
  %102 = vmatprep.subr.bf16.mxu0 0
  %103 = vmatpush1.bf16.msra.mxu0 0
  %104 = vmatprep.subr.bf16.mxu0 0
  %105 = vmatpush1.bf16.msra.mxu0 0
  %106 = vmatprep.subr.bf16.mxu0 %v76
  %107 = vmatpush1.bf16.msra.mxu0 %v75
  %108 = vmatprep.subr.bf16.mxu0 %v74
  %109 = vmatpush1.bf16.msra.mxu0 %v73
  %110 = vmatprep.subr.bf16.mxu0 0
  %111 = vmatpush2.bf16.msra.mxu0 0
  %112 = vmatprep.subr.bf16.mxu0 0
  %113 = vmatpush2.bf16.msra.mxu0 0
  %114 = vmatprep.subr.bf16.mxu0 0
  %115 = vmatpush2.bf16.msra.mxu0 0
  %116 = vmatprep.subr.bf16.mxu0 0
  %117 = vmatpush2.bf16.msra.mxu0 0
  %118 = vmatprep.subr.bf16.mxu0 0
  %119 = vmatpush2.bf16.msra.mxu0 0
  %120 = vmatprep.subr.bf16.mxu0 0
  %121 = vmatpush2.bf16.msra.mxu0 0
  %122 = vmatprep.subr.bf16.mxu0 0
  %123 = vmatpush2.bf16.msra.mxu0 0
  %124 = vmatprep.subr.bf16.mxu0 0
  %125 = vmatpush2.bf16.msra.mxu0 0
  %126 = vmatprep.mubr.bf16.mxu0 0
  %127 = vmatmul.mubr.bf16.gmra.mxu0 %v83
  %v128 = vpop.f32.mrf.mxu0
  %v129 = vadd.f32 %v34, %v128
  %v130 = vpop.f32.mrf.mxu0
  %v131 = vadd.f32 %v38, %v130
  %v132 = vpop.f32.mrf.mxu0
  %v133 = vadd.f32 %v34, %v132
  %v134 = vpop.f32.mrf.mxu0
  %v135 = vadd.f32 %v38, %v134
  %136 = vmatprep.mubr.bf16.mxu0 0
  %137 = vmatmul.mubr.bf16.gmra.mxu0 %v86
  %v138 = vpop.f32.mrf.mxu0
  %v139 = vadd.f32 %v34, %v138
  %v140 = vpop.f32.mrf.mxu0
  %v141 = vadd.f32 %v38, %v140
  %v142 = vpop.f32.mrf.mxu0
  %v143 = vadd.f32 %v34, %v142
  %v144 = vpop.f32.mrf.mxu0
  %v145 = vadd.f32 %v38, %v144
  %146 = vmatprep.mubr.bf16.mxu0 0
  %147 = vmatmul.mubr.bf16.gmra.mxu0 %v89
  %v148 = vpop.f32.mrf.mxu0
  %v149 = vadd.f32 %v34, %v148
  %v150 = vpop.f32.mrf.mxu0
  %v151 = vadd.f32 %v38, %v150
  %v152 = vpop.f32.mrf.mxu0
  %v153 = vadd.f32 %v34, %v152
  %v154 = vpop.f32.mrf.mxu0
  %v155 = vadd.f32 %v38, %v154
  %156 = vmatprep.mubr.bf16.mxu0 0
  %157 = vmatmul.mubr.bf16.gmra.mxu0 %v92
  %v158 = vpop.f32.mrf.mxu0
  %v159 = vadd.f32 %v34, %v158
  %v160 = vpop.f32.mrf.mxu0
  %v161 = vadd.f32 %v38, %v160
  %v162 = vpop.f32.mrf.mxu0
  %v163 = vadd.f32 %v34, %v162
  %v164 = vpop.f32.mrf.mxu0
  %v165 = vadd.f32 %v38, %v164
  %166 = vdwg.mxu0
  %v167 = vsub.f32 0.0, %v131
  %v168 = vsub.f32 0.0, %v135
  %v169 = vsub.f32 0.0, %v141
  %v170 = vsub.f32 0.0, %v145
  %v171 = vsub.f32 0.0, %v151
  %v172 = vsub.f32 0.0, %v155
  %v173 = vsub.f32 0.0, %v161
  %v174 = vsub.f32 0.0, %v165
  %v175 = vmul.f32 %v167, 1.442695
  %v176 = vpow.pop %v175
  %v177 = vmul.f32 %v168, 1.442695
  %v178 = vpow.pop %v177
  %v179 = vmul.f32 %v169, 1.442695
  %v180 = vpow.pop %v179
  %v181 = vmul.f32 %v170, 1.442695
  %v182 = vpow.pop %v181
  %v183 = vmul.f32 %v171, 1.442695
  %v184 = vpow.pop %v183
  %v185 = vmul.f32 %v172, 1.442695
  %v186 = vpow.pop %v185
  %v187 = vmul.f32 %v173, 1.442695
  %v188 = vpow.pop %v187
  %v189 = vmul.f32 %v174, 1.442695
  %v190 = vpow.pop %v189
  %v191 = vadd.f32 %v176, 1.0
  %v192 = vadd.f32 %v178, 1.0
  %v193 = vadd.f32 %v180, 1.0
  %v194 = vadd.f32 %v182, 1.0
  %v195 = vadd.f32 %v184, 1.0
  %v196 = vadd.f32 %v186, 1.0
  %v197 = vadd.f32 %v188, 1.0
  %v198 = vadd.f32 %v190, 1.0
  %v199 = vrcp.pop %v191
  %v200 = vrcp.pop %v192
  %v201 = vrcp.pop %v193
  %v202 = vrcp.pop %v194
  %v203 = vrcp.pop %v195
  %v204 = vrcp.pop %v196
  %v205 = vrcp.pop %v197
  %v206 = vrcp.pop %v198
  %v207 = vtanh.pop %v129
  %v208 = vtanh.pop %v133
  %v209 = vtanh.pop %v139
  %v210 = vtanh.pop %v143
  %v211 = vtanh.pop %v149
  %v212 = vtanh.pop %v153
  %v213 = vtanh.pop %v159
  %v214 = vtanh.pop %v163
  %v215 = vmul.f32 %v199, %v207
  %v216 = vmul.f32 %v200, %v208
  %v217 = vmul.f32 %v201, %v209
  %v218 = vmul.f32 %v202, %v210
  %v219 = vmul.f32 %v203, %v211
  %v220 = vmul.f32 %v204, %v212
  %v221 = vmul.f32 %v205, %v213
  %v222 = vmul.f32 %v206, %v214
  %223 = vst.msk [vmem:[%s3] sm:$0xff] %vm81, %v215
  %224 = vst.msk [vmem:[%s3 + $0x8] sm:$0xff] %vm81, %v216
  %225 = vst.msk [vmem:[%s3 + $0x10] sm:$0xff] %vm81, %v217
  %226 = vst.msk [vmem:[%s3 + $0x18] sm:$0xff] %vm81, %v218
  %227 = vst.msk [vmem:[%s3 + $0x20] sm:$0xff] %vm81, %v219
  %228 = vst.msk [vmem:[%s3 + $0x28] sm:$0xff] %vm81, %v220
  %229 = vst.msk [vmem:[%s3 + $0x30] sm:$0xff] %vm81, %v221
  %230 = vst.msk [vmem:[%s3 + $0x38] sm:$0xff] %vm81, %v222
  %231 = vst.msk [vmem:[%s4] sm:$0xff] %vm81, %v129
  %232 = vst.msk [vmem:[%s4 + $0x8] sm:$0xff] %vm81, %v133
  %233 = vst.msk [vmem:[%s4 + $0x10] sm:$0xff] %vm81, %v139
  %234 = vst.msk [vmem:[%s4 + $0x18] sm:$0xff] %vm81, %v143
  %235 = vst.msk [vmem:[%s4 + $0x20] sm:$0xff] %vm81, %v149
  %236 = vst.msk [vmem:[%s4 + $0x28] sm:$0xff] %vm81, %v153
  %237 = vst.msk [vmem:[%s4 + $0x30] sm:$0xff] %vm81, %v159
  %238 = vst.msk [vmem:[%s4 + $0x38] sm:$0xff] %vm81, %v163
  // Predicated region
  $region14: #{tpu_custom_call.1} parent=0 // pred_check
    _
  $region15: #{tpu_custom_call.1} parent=0 // pred_check_branch
    %240 = sbr.rel (0) target = $region17
  $region16: #{tpu_custom_call.1} parent=0 // pred_region
    _
  $region17: #{tpu_custom_call.1} parent=0 // pred_fallthru
    _
  // Predicated region
  $region18: #{tpu_custom_call.1} parent=0 // pred_check
    _
  $region19: #{tpu_custom_call.1} parent=0 // pred_check_branch
    %242 = sbr.rel (0) target = $region21
  $region20: #{tpu_custom_call.1} parent=0 // pred_region
    _
  $region21: #{tpu_custom_call.1} parent=0 // pred_fallthru
    _
  // Predicated region
  $region22: #{tpu_custom_call.1} parent=0 // pred_check
    _
  $region23: #{tpu_custom_call.1} parent=0 // pred_check_branch
    %244 = sbr.rel (0) target = $region25
  $region24: #{tpu_custom_call.1} parent=0 // pred_region
    _
  $region25: #{tpu_custom_call.1} parent=0 // pred_fallthru
    _
  // Predicated region
  $region26: #{tpu_custom_call.1} parent=0 // pred_check
    _
  $region27: #{tpu_custom_call.1} parent=0 // pred_check_branch
    %246 = sbr.rel (0) target = $region29
  $region28: #{tpu_custom_call.1} parent=0 // pred_region
    _
  $region29: #{tpu_custom_call.1} parent=0 // pred_fallthru
    _

</llo_original>
